<compile_context>
chip_gen: v7x
topology: tpu7x:2x2x1
jax: 0.10.0
libtpu: 0.0.40
codegen_flags: <defaults>
</compile_context>

<pallas_src>
import jax
import jax.numpy as jnp
from jax.experimental import pallas as pl
from jax.experimental.pallas import tpu as pltpu

# ---------------- module hyper-parameters (small demo sizes) -----------------
DATA_DIM = 4                  # spatio-temporal input dim (time + 3 spatial)
SPATIAL_DIM = DATA_DIM - 1
N_BASIS = 4
NN_WIDTH = 32
BASIS_DIM = 32                # == NN_WIDTH so every stacked dim is 128
S = N_BASIS * NN_WIDTH        # per-path stacked width (= 128 lanes)
S2 = 2 * S                    # fused x+y stacked width (= 256 lanes)
assert BASIS_DIM == NN_WIDTH and S == 128

INIT_GAIN = 0.5
INIT_BIAS = 0.001
INIT_STD = 1.0
BETA = 1.0

BATCH = 16
MAX_TILE = 512                # cap on rows per grid step for large batches


# ----------------------------- in-kernel math --------------------------------
def _softplus(v):
    # numerically stable softplus
    return jnp.maximum(v, 0.0) + jnp.log(1.0 + jnp.exp(-jnp.abs(v)))


def st_deep_basis_kernel(x_ref, y_ref, head_ref, wrest_ref, mix_ref, out_ref):
    x = x_ref[...]                                # [TB, DATA_DIM]
    y = y_ref[...]                                # [TB, DATA_DIM]

    # ---- fused x/y basis stack -------------------------------------------
    # head_ref: [2*DATA_DIM + 4, 2S]
    #   rows 0:DATA_DIM          -> layer-1 weights feeding lanes 0:S   (x nets,
    #                               time row zeroed, rest of lanes zero)
    #   rows DATA_DIM:2*DATA_DIM -> layer-1 weights feeding lanes S:2S  (y nets)
    #   rows 2*DATA_DIM+[0..3]   -> biases b1..b4 (x biases | y biases)
    # wrest_ref: [3, 2S, 2S] block-diagonal layer 2/3/4 weights (8 basis blocks)
    w1x = head_ref[0:DATA_DIM, :]
    w1y = head_ref[DATA_DIM:2 * DATA_DIM, :]
    boff = 2 * DATA_DIM
    b1 = head_ref[boff + 0:boff + 1, :]
    b2 = head_ref[boff + 1:boff + 2, :]
    b3 = head_ref[boff + 2:boff + 3, :]
    b4 = head_ref[boff + 3:boff + 4, :]

    h = _softplus(jnp.dot(x, w1x, preferred_element_type=jnp.float32)
                  + jnp.dot(y, w1y, preferred_element_type=jnp.float32) + b1)
    h = _softplus(jnp.dot(h, wrest_ref[0], preferred_element_type=jnp.float32) + b2)
    h = _softplus(jnp.dot(h, wrest_ref[1], preferred_element_type=jnp.float32) + b3)
    z = jnp.dot(h, wrest_ref[2], preferred_element_type=jnp.float32) + b4
    zb = jnp.tanh(0.5 * z)                        # exact rewrite of sigmoid(z)*2-1

    xb = zb[:, 0:S]                               # [TB, S]
    yb = zb[:, S:S2]                              # [TB, S]

    # mix_ref already holds softplus(theta_i) repeated basis_dim times (host-side).
    mix = mix_ref[...]                            # [1, S]
    sval = jnp.sum(mix * xb * yb, axis=1, keepdims=True)       # spatial kernel [TB,1]

    tval = BETA * jnp.exp(-BETA * (x[:, 0:1] - y[:, 0:1]))      # temporal kernel [TB,1]
    out_ref[...] = tval * sval


# ------------------------------- wrapper --------------------------------------
def st_deep_basis_forward(x, y, packed, *, max_tile=MAX_TILE):
    head, wrest, mixw = packed
    b = x.shape[0]

    # Pad batch to a sublane multiple of 8 (demo batch already is).
    pad = (-b) % 8
    if pad:
        zrows = jnp.zeros((pad, DATA_DIM), x.dtype)
        x = jnp.concatenate([x, zrows], axis=0)
        y = jnp.concatenate([y, zrows], axis=0)
    bp = b + pad

    # Adaptive tile: whole batch in one step when small; <=max_tile rows/step
    # otherwise (keeps >=2 "parallel" steps on large batches for megacore).
    tile = min(bp, max_tile)
    while bp % tile != 0:
        tile -= 8
    grid = (bp // tile,)

    def fixed(arr):                              # whole-array, grid-invariant block
        nd = arr.ndim
        return pl.BlockSpec(arr.shape, lambda i, _nd=nd: (0,) * _nd)

    out = pl.pallas_call(
        st_deep_basis_kernel,
        out_shape=jax.ShapeDtypeStruct((bp, 1), jnp.float32),
        grid=grid,
        in_specs=[
            pl.BlockSpec((tile, DATA_DIM), lambda i: (i, 0)),
            pl.BlockSpec((tile, DATA_DIM), lambda i: (i, 0)),
            fixed(head), fixed(wrest), fixed(mixw),
        ],
        out_specs=pl.BlockSpec((tile, 1), lambda i: (i, 0)),
        compiler_params=pltpu.CompilerParams(
            dimension_semantics=("parallel",)),
    )(x, y, head, wrest, mixw)
    return out[:b, 0]


# --------------------------- parameter init / packing -------------------------
def _xavier_uniform(key, fan_in, fan_out):
    a = INIT_GAIN * (6.0 / (fan_in + fan_out)) ** 0.5
    return jax.random.uniform(key, (fan_in, fan_out), jnp.float32, -a, a)


def init_basis_net(key):
    """One DeepNetworkBasis: 4 Linear layers stored as (W[in,out], b[out])."""
    dims = [(SPATIAL_DIM, NN_WIDTH), (NN_WIDTH, NN_WIDTH),
            (NN_WIDTH, NN_WIDTH), (NN_WIDTH, BASIS_DIM)]
    ks = jax.random.split(key, 4)
    return [(_xavier_uniform(k, i, o), jnp.full((o,), INIT_BIAS, jnp.float32))
            for k, (i, o) in zip(ks, dims)]


def init_params(key):
    kx, ky, kw = jax.random.split(key, 3)
    return {
        "x": [init_basis_net(k) for k in jax.random.split(kx, N_BASIS)],
        "y": [init_basis_net(k) for k in jax.random.split(ky, N_BASIS)],
        "mix": INIT_STD * jax.random.normal(kw, (N_BASIS,), jnp.float32),
    }


def _block_diag(mats):
    a, b = mats[0].shape
    out = jnp.zeros((len(mats) * a, len(mats) * b), jnp.float32)
    for i, m in enumerate(mats):
        out = out.at[i * a:(i + 1) * a, i * b:(i + 1) * b].set(m)
    return out


def pack_params(params):
    """One-time (init-time) repack into the fused 256-lane kernel layout."""
    def zero_time_row(w):            # [SPATIAL_DIM, NN_WIDTH] -> [DATA_DIM, NN_WIDTH]
        return jnp.concatenate([jnp.zeros((1, w.shape[1]), jnp.float32), w], axis=0)

    # layer-1 weights: x nets feed lanes 0:S, y nets feed lanes S:2S
    w1x = jnp.concatenate([zero_time_row(n[0][0]) for n in params["x"]], axis=1)
    w1y = jnp.concatenate([zero_time_row(n[0][0]) for n in params["y"]], axis=1)
    w1_full = jnp.zeros((2 * DATA_DIM, S2), jnp.float32)
    w1_full = w1_full.at[0:DATA_DIM, 0:S].set(w1x)
    w1_full = w1_full.at[DATA_DIM:2 * DATA_DIM, S:S2].set(w1y)

    # biases per layer: [x biases | y biases] -> [4, 2S]
    biases = jnp.stack([
        jnp.concatenate([n[l][1] for n in params["x"]]
                        + [n[l][1] for n in params["y"]])
        for l in range(4)])

    head = jnp.concatenate([w1_full, biases], axis=0)            # [2D+4, 2S]

    # layers 2..4: block-diagonal over the 8 stacked basis nets (4 x + 4 y)
    wrest = jnp.stack([
        _block_diag([n[l][0] for n in params["x"]]
                    + [n[l][0] for n in params["y"]])
        for l in (1, 2, 3)])                                     # [3, 2S, 2S]

    # softplus(theta) hoisted to pack time, repeated basis_dim times per basis.
    mixw = jnp.repeat(jax.nn.softplus(params["mix"]), BASIS_DIM)[None, :]  # [1, S]
    return head, wrest, mixw


# -------------------------------- reference -----------------------------------
def _ref_basis(s, net):
    (w1, b1), (w2, b2), (w3, b3), (w4, b4) = net
    h = jax.nn.softplus(s @ w1 + b1)
    h = jax.nn.softplus(h @ w2 + b2)
    h = jax.nn.softplus(h @ w3 + b3)
    return jax.nn.sigmoid(h @ w4 + b4) * 2.0 - 1.0


def ref_forward(x, y, params):
    xt, yt = x[:, 0], y[:, 0]
    xs, ys = x[:, 1:], y[:, 1:]
    tval = BETA * jnp.exp(-BETA * (xt - yt))
    k = jnp.zeros((x.shape[0],), jnp.float32)
    for i in range(N_BASIS):
        xb = _ref_basis(xs, params["x"][i])
        yb = _ref_basis(ys, params["y"][i])
        w = jax.nn.softplus(params["mix"][i])
        k = k + (w * xb * yb).sum(axis=1)
    return tval * k


# ----------------------------------- main --------------------------------------
if __name__ == "__main__":
    key = jax.random.PRNGKey(0)
    kx, ky, kp = jax.random.split(key, 3)

    x = jax.random.normal(kx, (BATCH, DATA_DIM), jnp.float32)
    y = jax.random.normal(ky, (BATCH, DATA_DIM), jnp.float32)

    params = init_params(kp)
    packed = pack_params(params)

    out = st_deep_basis_forward(x, y, packed)
    out = jax.block_until_ready(out)

    with jax.default_matmul_precision("highest"):
        ref = jax.block_until_ready(ref_forward(x, y, params))

    assert out.shape == (BATCH,)
    assert jnp.allclose(out, ref, rtol=1e-4, atol=1e-5), (out, ref)

    print("KERNEL_OK")
</pallas_src>

<mosaic_0001>
module attributes {stable_mosaic.version = 11 : i64} {
  func.func @st_deep_basis_kernel(%arg0: i32, %arg1: memref<16x4xf32, #tpu.memory_space<vmem>>, %arg2: memref<16x4xf32, #tpu.memory_space<vmem>>, %arg3: memref<12x256xf32, #tpu.memory_space<vmem>>, %arg4: memref<3x256x256xf32, #tpu.memory_space<vmem>>, %arg5: memref<1x128xf32, #tpu.memory_space<vmem>>, %arg6: memref<16x1xf32, #tpu.memory_space<vmem>>) attributes {dimension_semantics = [#tpu.dimension_semantics<parallel>], iteration_bounds = array<i64: 1>, scalar_prefetch = 0 : i64, scratch_operands = 0 : i64, tpu.core_type = #tpu.core_type<tc>, window_params = [{transform_indices = @transform_0, window_bounds = array<i64: 16, 4>}, {transform_indices = @transform_1, window_bounds = array<i64: 16, 4>}, {pipeline_mode = #tpu.pipeline_mode<synchronous>, transform_indices = @transform_2, window_bounds = array<i64: 12, 256>}, {pipeline_mode = #tpu.pipeline_mode<synchronous>, transform_indices = @transform_3, window_bounds = array<i64: 3, 256, 256>}, {pipeline_mode = #tpu.pipeline_mode<synchronous>, transform_indices = @transform_4, window_bounds = array<i64: 1, 128>}, {transform_indices = @transform_5, window_bounds = array<i64: 16, 1>}]} {
    %c0 = arith.constant 0 : index
    %c0_0 = arith.constant 0 : index
    %0 = vector.load %arg1[%c0, %c0_0] : memref<16x4xf32, #tpu.memory_space<vmem>>, vector<16x4xf32>
    %c0_1 = arith.constant 0 : index
    %c0_2 = arith.constant 0 : index
    %1 = vector.load %arg2[%c0_1, %c0_2] : memref<16x4xf32, #tpu.memory_space<vmem>>, vector<16x4xf32>
    %c0_3 = arith.constant 0 : index
    %c0_4 = arith.constant 0 : index
    %2 = vector.load %arg3[%c0_3, %c0_4] : memref<12x256xf32, #tpu.memory_space<vmem>>, vector<4x256xf32>
    %c4 = arith.constant 4 : index
    %c0_5 = arith.constant 0 : index
    %3 = vector.load %arg3[%c4, %c0_5] : memref<12x256xf32, #tpu.memory_space<vmem>>, vector<4x256xf32>
    %c8 = arith.constant 8 : index
    %c0_6 = arith.constant 0 : index
    %4 = vector.load %arg3[%c8, %c0_6] : memref<12x256xf32, #tpu.memory_space<vmem>>, vector<1x256xf32>
    %c9 = arith.constant 9 : index
    %c0_7 = arith.constant 0 : index
    %5 = vector.load %arg3[%c9, %c0_7] : memref<12x256xf32, #tpu.memory_space<vmem>>, vector<1x256xf32>
    %c10 = arith.constant 10 : index
    %c0_8 = arith.constant 0 : index
    %6 = vector.load %arg3[%c10, %c0_8] : memref<12x256xf32, #tpu.memory_space<vmem>>, vector<1x256xf32>
    %c11 = arith.constant 11 : index
    %c0_9 = arith.constant 0 : index
    %7 = vector.load %arg3[%c11, %c0_9] : memref<12x256xf32, #tpu.memory_space<vmem>>, vector<1x256xf32>
    %cst = arith.constant dense<0.000000e+00> : vector<16x256xf32>
    %8 = tpu.matmul %0, %2, %cst {dimension_numbers = #tpu.dot_dimension_numbers<[1], [0], [0], [1], [0, 0, 1, 1], [], []>} : vector<16x4xf32>, vector<4x256xf32>, vector<16x256xf32> -> vector<16x256xf32>
    %cst_10 = arith.constant dense<0.000000e+00> : vector<16x256xf32>
    %9 = tpu.matmul %1, %3, %cst_10 {dimension_numbers = #tpu.dot_dimension_numbers<[1], [0], [0], [1], [0, 0, 1, 1], [], []>} : vector<16x4xf32>, vector<4x256xf32>, vector<16x256xf32> -> vector<16x256xf32>
    %10 = arith.addf %8, %9 : vector<16x256xf32>
    %11 = vector.broadcast %4 : vector<1x256xf32> to vector<16x256xf32>
    %12 = arith.addf %10, %11 : vector<16x256xf32>
    %cst_11 = arith.constant 0.000000e+00 : f32
    %13 = vector.broadcast %cst_11 : f32 to vector<16x256xf32>
    %14 = arith.maximumf %12, %13 : vector<16x256xf32>
    %15 = math.absf %12 : vector<16x256xf32>
    %cst_12 = arith.constant 0.000000e+00 : f32
    %16 = vector.broadcast %cst_12 : f32 to vector<16x256xf32>
    %17 = arith.subf %16, %15 : vector<16x256xf32>
    %18 = math.exp %17 : vector<16x256xf32>
    %cst_13 = arith.constant 1.000000e+00 : f32
    %19 = vector.broadcast %cst_13 : f32 to vector<16x256xf32>
    %20 = arith.addf %19, %18 : vector<16x256xf32>
    %21 = math.log %20 : vector<16x256xf32>
    %22 = arith.addf %14, %21 : vector<16x256xf32>
    %c0_14 = arith.constant 0 : index
    %c0_15 = arith.constant 0 : index
    %c0_16 = arith.constant 0 : index
    %23 = vector.load %arg4[%c0_14, %c0_15, %c0_16] : memref<3x256x256xf32, #tpu.memory_space<vmem>>, vector<1x256x256xf32>
    %24 = vector.shape_cast %23 : vector<1x256x256xf32> to vector<256x256xf32>
    %cst_17 = arith.constant dense<0.000000e+00> : vector<16x256xf32>
    %25 = tpu.matmul %22, %24, %cst_17 {dimension_numbers = #tpu.dot_dimension_numbers<[1], [0], [0], [1], [0, 0, 1, 1], [], []>} : vector<16x256xf32>, vector<256x256xf32>, vector<16x256xf32> -> vector<16x256xf32>
    %26 = vector.broadcast %5 : vector<1x256xf32> to vector<16x256xf32>
    %27 = arith.addf %25, %26 : vector<16x256xf32>
    %cst_18 = arith.constant 0.000000e+00 : f32
    %28 = vector.broadcast %cst_18 : f32 to vector<16x256xf32>
    %29 = arith.maximumf %27, %28 : vector<16x256xf32>
    %30 = math.absf %27 : vector<16x256xf32>
    %cst_19 = arith.constant 0.000000e+00 : f32
    %31 = vector.broadcast %cst_19 : f32 to vector<16x256xf32>
    %32 = arith.subf %31, %30 : vector<16x256xf32>
    %33 = math.exp %32 : vector<16x256xf32>
    %cst_20 = arith.constant 1.000000e+00 : f32
    %34 = vector.broadcast %cst_20 : f32 to vector<16x256xf32>
    %35 = arith.addf %34, %33 : vector<16x256xf32>
    %36 = math.log %35 : vector<16x256xf32>
    %37 = arith.addf %29, %36 : vector<16x256xf32>
    %c1 = arith.constant 1 : index
    %c0_21 = arith.constant 0 : index
    %c0_22 = arith.constant 0 : index
    %38 = vector.load %arg4[%c1, %c0_21, %c0_22] : memref<3x256x256xf32, #tpu.memory_space<vmem>>, vector<1x256x256xf32>
    %39 = vector.shape_cast %38 : vector<1x256x256xf32> to vector<256x256xf32>
    %cst_23 = arith.constant dense<0.000000e+00> : vector<16x256xf32>
    %40 = tpu.matmul %37, %39, %cst_23 {dimension_numbers = #tpu.dot_dimension_numbers<[1], [0], [0], [1], [0, 0, 1, 1], [], []>} : vector<16x256xf32>, vector<256x256xf32>, vector<16x256xf32> -> vector<16x256xf32>
    %41 = vector.broadcast %6 : vector<1x256xf32> to vector<16x256xf32>
    %42 = arith.addf %40, %41 : vector<16x256xf32>
    %cst_24 = arith.constant 0.000000e+00 : f32
    %43 = vector.broadcast %cst_24 : f32 to vector<16x256xf32>
    %44 = arith.maximumf %42, %43 : vector<16x256xf32>
    %45 = math.absf %42 : vector<16x256xf32>
    %cst_25 = arith.constant 0.000000e+00 : f32
    %46 = vector.broadcast %cst_25 : f32 to vector<16x256xf32>
    %47 = arith.subf %46, %45 : vector<16x256xf32>
    %48 = math.exp %47 : vector<16x256xf32>
    %cst_26 = arith.constant 1.000000e+00 : f32
    %49 = vector.broadcast %cst_26 : f32 to vector<16x256xf32>
    %50 = arith.addf %49, %48 : vector<16x256xf32>
    %51 = math.log %50 : vector<16x256xf32>
    %52 = arith.addf %44, %51 : vector<16x256xf32>
    %c2 = arith.constant 2 : index
    %c0_27 = arith.constant 0 : index
    %c0_28 = arith.constant 0 : index
    %53 = vector.load %arg4[%c2, %c0_27, %c0_28] : memref<3x256x256xf32, #tpu.memory_space<vmem>>, vector<1x256x256xf32>
    %54 = vector.shape_cast %53 : vector<1x256x256xf32> to vector<256x256xf32>
    %cst_29 = arith.constant dense<0.000000e+00> : vector<16x256xf32>
    %55 = tpu.matmul %52, %54, %cst_29 {dimension_numbers = #tpu.dot_dimension_numbers<[1], [0], [0], [1], [0, 0, 1, 1], [], []>} : vector<16x256xf32>, vector<256x256xf32>, vector<16x256xf32> -> vector<16x256xf32>
    %56 = vector.broadcast %7 : vector<1x256xf32> to vector<16x256xf32>
    %57 = arith.addf %55, %56 : vector<16x256xf32>
    %cst_30 = arith.constant 5.000000e-01 : f32
    %58 = vector.broadcast %cst_30 : f32 to vector<16x256xf32>
    %59 = arith.mulf %58, %57 : vector<16x256xf32>
    %60 = math.tanh %59 : vector<16x256xf32>
    %61 = vector.extract_strided_slice %60 {offsets = [0, 0], sizes = [16, 128], strides = [1, 1]} : vector<16x256xf32> to vector<16x128xf32>
    %62 = vector.extract_strided_slice %60 {offsets = [0, 128], sizes = [16, 128], strides = [1, 1]} : vector<16x256xf32> to vector<16x128xf32>
    %c0_31 = arith.constant 0 : index
    %c0_32 = arith.constant 0 : index
    %63 = vector.load %arg5[%c0_31, %c0_32] : memref<1x128xf32, #tpu.memory_space<vmem>>, vector<1x128xf32>
    %64 = vector.broadcast %63 : vector<1x128xf32> to vector<16x128xf32>
    %65 = arith.mulf %64, %61 : vector<16x128xf32>
    %66 = arith.mulf %65, %62 : vector<16x128xf32>
    %cst_33 = arith.constant dense<0.000000e+00> : vector<16xf32>
    %67 = vector.multi_reduction <add>, %66, %cst_33 [1] : vector<16x128xf32> to vector<16xf32>
    %68 = vector.shape_cast %67 : vector<16xf32> to vector<16x1xf32>
    %69 = vector.extract_strided_slice %0 {offsets = [0, 0], sizes = [16, 1], strides = [1, 1]} : vector<16x4xf32> to vector<16x1xf32>
    %70 = vector.extract_strided_slice %1 {offsets = [0, 0], sizes = [16, 1], strides = [1, 1]} : vector<16x4xf32> to vector<16x1xf32>
    %71 = arith.subf %69, %70 : vector<16x1xf32>
    %cst_34 = arith.constant -1.000000e+00 : f32
    %72 = vector.broadcast %cst_34 : f32 to vector<16x1xf32>
    %73 = arith.mulf %72, %71 : vector<16x1xf32>
    %74 = math.exp %73 : vector<16x1xf32>
    %cst_35 = arith.constant 1.000000e+00 : f32
    %75 = vector.broadcast %cst_35 : f32 to vector<16x1xf32>
    %76 = arith.mulf %75, %74 : vector<16x1xf32>
    %77 = arith.mulf %76, %68 : vector<16x1xf32>
    %c0_36 = arith.constant 0 : index
    %c0_37 = arith.constant 0 : index
    %78 = vector.load %arg6[%c0_36, %c0_37] : memref<16x1xf32, #tpu.memory_space<vmem>>, vector<16x1xf32>
    tpu.vector_store %arg6[%c0_36, %c0_37], %77 {strides = array<i32>} : memref<16x1xf32, #tpu.memory_space<vmem>>, vector<16x1xf32>,
    return
  }
  func.func @transform_0(%arg0: i32) -> (i32, i32) {
    %c0_i32 = arith.constant 0 : i32
    %c0_i32_0 = arith.constant 0 : i32
    return %arg0, %c0_i32 : i32, i32
  }
  func.func @transform_1(%arg0: i32) -> (i32, i32) {
    %c0_i32 = arith.constant 0 : i32
    %c0_i32_0 = arith.constant 0 : i32
    return %arg0, %c0_i32 : i32, i32
  }
  func.func @transform_2(%arg0: i32) -> (i32, i32) {
    %c0_i32 = arith.constant 0 : i32
    %c0_i32_0 = arith.constant 0 : i32
    %c0_i32_1 = arith.constant 0 : i32
    return %c0_i32, %c0_i32_0 : i32, i32
  }
  func.func @transform_3(%arg0: i32) -> (i32, i32, i32) {
    %c0_i32 = arith.constant 0 : i32
    %c0_i32_0 = arith.constant 0 : i32
    %c0_i32_1 = arith.constant 0 : i32
    %c0_i32_2 = arith.constant 0 : i32
    return %c0_i32, %c0_i32_0, %c0_i32_1 : i32, i32, i32
  }
  func.func @transform_4(%arg0: i32) -> (i32, i32) {
    %c0_i32 = arith.constant 0 : i32
    %c0_i32_0 = arith.constant 0 : i32
    %c0_i32_1 = arith.constant 0 : i32
    return %c0_i32, %c0_i32_0 : i32, i32
  }
  func.func @transform_5(%arg0: i32) -> (i32, i32) {
    %c0_i32 = arith.constant 0 : i32
    %c0_i32_0 = arith.constant 0 : i32
    return %arg0, %c0_i32 : i32, i32
  }
}

</mosaic_0001>

<llo_original>
// kernel: tpu_custom_call.1
$region0: #{tpu_custom_call.1}
  #allocation0 [shape = 'u32[]', space=smem, size = 0x4, offset = 0x4, fixed_abs, tag = 'smem constant byte address 0x4 - core index']
  #allocation1 [shape = 'u32[144,128]{1,0:T(1,128)}', space=vmem, size = 0x12000, scoped, tag = 'internal scratch']
  %s0 = inlined_call_operand.vmem [shape: f32[16,4], index: 0, kind: input, shape index: {}]
  %s1 = inlined_call_operand.vmem [shape: f32[16,4], index: 1, kind: input, shape index: {}]
  %s2 = inlined_call_operand.vmem [shape: f32[12,256], index: 2, kind: input, shape index: {}]
  %s3 = inlined_call_operand.hbm [shape: f32[3,256,256], index: 3, kind: input, shape index: {}]
  %s4 = inlined_call_operand.vmem [shape: f32[1,128], index: 4, kind: input, shape index: {}]
  %s5 = inlined_call_operand.vmem [shape: f32[16,1], index: 5, kind: output, shape index: {}]
  %s6 = sld [smem:[#allocation0]]
  $region34: #{tpu_custom_call.1} parent=0
    _
  %s8 = ssub.s32 1, %s6
  %s9 = scalar_select 0, %s8, %s6
  $region1: #{tpu_custom_call.1} parent=0
    #allocation2 [shape = 'u8[786432]{0}', space=vmem, size = 0xc0000, scoped, tag = 'input window, operand 3, single buffered']
    #allocation3 [shape = 's32[1]{0}', space=sflag, size = 0x4, scoped, tag = 'scoped memory for tpu_custom_call.1']
    %10 = vsyncpa [#allocation3], 0
    // Predicated region
    $region2: #{tpu_custom_call.1} parent=1 // pred_check
      _
    $region3: #{tpu_custom_call.1} parent=1 // pred_check_branch
      %12 = sbr.rel (0) target = $region5
    $region4: #{tpu_custom_call.1} parent=1 // pred_region
      _
    $region5: #{tpu_custom_call.1} parent=1 // pred_fallthru
      _
    // Predicated region
    $region6: #{tpu_custom_call.1} parent=1 // pred_check
      _
    $region7: #{tpu_custom_call.1} parent=1 // pred_check_branch
      %14 = sbr.rel (0) target = $region9
    $region8: #{tpu_custom_call.1} parent=1 // pred_region
      _
    $region9: #{tpu_custom_call.1} parent=1 // pred_fallthru
      _
    // Predicated region
    $region10: #{tpu_custom_call.1} parent=1 // pred_check
      _
    $region11: #{tpu_custom_call.1} parent=1 // pred_check_branch
      %16 = sbr.rel (0) target = $region13
    $region12: #{tpu_custom_call.1} parent=1 // pred_region
      _
    $region13: #{tpu_custom_call.1} parent=1 // pred_fallthru
      _
    // Predicated region
    $region14: #{tpu_custom_call.1} parent=1 // pred_check
      _
    $region15: #{tpu_custom_call.1} parent=1 // pred_check_branch
      %18 = sbr.rel (0) target = $region17
    $region16: #{tpu_custom_call.1} parent=1 // pred_region
      %s20 = ssub.s32 24576, 24576
      %21 = vsyncadd [#allocation3], %s20
      %s22 = sshll.u32 [#allocation2], 4
      %s23 = int_to_ptr.vmem [resolvable:$true] %s22
      %28 = dma.hbm_to_vmem [thread:$0]  %s3, 24576, %s23, [#allocation3], 256, 256, 16
    $region17: #{tpu_custom_call.1} parent=1 // pred_fallthru
      _
    // Predicated region
    $region18: #{tpu_custom_call.1} parent=1 // pred_check
      _
    $region19: #{tpu_custom_call.1} parent=1 // pred_check_branch
      %30 = sbr.rel (0) target = $region21
    $region20: #{tpu_custom_call.1} parent=1 // pred_region
      _
    $region21: #{tpu_custom_call.1} parent=1 // pred_fallthru
      _
    // Predicated region
    $region22: #{tpu_custom_call.1} parent=1 // pred_check
      _
    $region23: #{tpu_custom_call.1} parent=1 // pred_check_branch
      %32 = sbr.rel (0) target = $region25
    $region24: #{tpu_custom_call.1} parent=1 // pred_region
      %33 = dma.done [#allocation3], 24576
    $region25: #{tpu_custom_call.1} parent=1 // pred_fallthru
      _
    %v34 = vld [vmem:[%s0] sm:$0xff]
    %v35 = vld [vmem:[%s0 + $0x8] sm:$0xff]
    %v36 = vld [vmem:[%s1] sm:$0xff]
    %v37 = vld [vmem:[%s1 + $0x8] sm:$0xff]
    %v38 = vld [vmem:[%s2] sm:$0xf]
    %v39 = vld [vmem:[%s2 + $0x8] sm:$0xf]
    %v40 = vld [vmem:[%s2] sm:$0xf0]
    %v41 = vld [vmem:[%s2 + $0x8] sm:$0xf0]
    %s42 = scalar_lea.vmem %s2, 16
    %v43 = vld [vmem:[%s42] ss:$8 sm:$0x3]
    %s44 = scalar_lea.vmem %s2, 17
    %v45 = vld [vmem:[%s44] ss:$8 sm:$0x3]
    %s46 = scalar_lea.vmem %s2, 18
    %v47 = vld [vmem:[%s46] ss:$8 sm:$0x3]
    %s48 = scalar_lea.vmem %s2, 19
    %v49 = vld [vmem:[%s48] ss:$8 sm:$0x3]
    %v52 = vrot.slane %v40, 4
    %v53 = vrot.slane %v41, 4
    %vm54 = vcmask 31744
    %v56 = vsel %vm54, %v36, 0
    %v59 = vsel %vm54, %v37, 0
    %vm61 = vcmask 1043456
    %v62 = vsel %vm61, %v52, 0
    %v64 = vsel %vm61, %v53, 0
    %66 = vmatprep.subr.mxu0 %v64
    %67 = vmatpush1.msra.mxu0 %v62
    %68 = vmatprep.subr.mxu0 0.0
    %69 = vmatpush1.msra.mxu0 0.0
    %70 = vmatprep.subr.mxu0 0.0
    %71 = vmatpush1.msra.mxu0 0.0
    %72 = vmatprep.subr.mxu0 0.0
    %73 = vmatpush1.msra.mxu0 0.0
    %74 = vmatprep.subr.mxu0 0.0
    %75 = vmatpush1.msra.mxu0 0.0
    %76 = vmatprep.subr.mxu0 0.0
    %77 = vmatpush1.msra.mxu0 0.0
    %78 = vmatprep.subr.mxu0 0.0
    %79 = vmatpush1.msra.mxu0 0.0
    %80 = vmatprep.subr.mxu0 0.0
    %81 = vmatpush1.msra.mxu0 0.0
    %82 = vmatprep.subr.mxu0 0.0
    %83 = vmatpush1.msra.mxu0 0.0
    %84 = vmatprep.subr.mxu0 0.0
    %85 = vmatpush1.msra.mxu0 0.0
    %86 = vmatprep.subr.mxu0 0.0
    %87 = vmatpush1.msra.mxu0 0.0
    %88 = vmatprep.subr.mxu0 0.0
    %89 = vmatpush1.msra.mxu0 0.0
    %90 = vmatprep.subr.mxu0 0.0
    %91 = vmatpush1.msra.mxu0 0.0
    %92 = vmatprep.subr.mxu0 0.0
    %93 = vmatpush1.msra.mxu0 0.0
    %94 = vmatprep.subr.mxu0 0.0
    %95 = vmatpush1.msra.mxu0 0.0
    %96 = vmatprep.subr.mxu0 0.0
    %97 = vmatpush1.msra.mxu0 0.0
    %98 = vmatprep.subr.mxu0 0.0
    %99 = vmatpush1.msra.mxu0 0.0
    %100 = vmatprep.subr.mxu0 0.0
    %101 = vmatpush1.msra.mxu0 0.0
    %102 = vmatprep.subr.mxu0 0.0
    %103 = vmatpush1.msra.mxu0 0.0
    %104 = vmatprep.subr.mxu0 0.0
    %105 = vmatpush1.msra.mxu0 0.0
    %106 = vmatprep.subr.mxu0 0.0
    %107 = vmatpush1.msra.mxu0 0.0
    %108 = vmatprep.subr.mxu0 0.0
    %109 = vmatpush1.msra.mxu0 0.0
    %110 = vmatprep.subr.mxu0 0.0
    %111 = vmatpush1.msra.mxu0 0.0
    %112 = vmatprep.subr.mxu0 0.0
    %113 = vmatpush1.msra.mxu0 0.0
    %114 = vmatprep.subr.mxu0 0.0
    %115 = vmatpush1.msra.mxu0 0.0
    %116 = vmatprep.subr.mxu0 0.0
    %117 = vmatpush1.msra.mxu0 0.0
    %118 = vmatprep.subr.mxu0 0.0
    %119 = vmatpush1.msra.mxu0 0.0
    %120 = vmatprep.subr.mxu0 0.0
    %121 = vmatpush1.msra.mxu0 0.0
    %122 = vmatprep.subr.mxu0 0.0
    %123 = vmatpush1.msra.mxu0 0.0
    %124 = vmatprep.subr.mxu0 0.0
    %125 = vmatpush1.msra.mxu0 0.0
    %126 = vmatprep.subr.mxu0 0.0
    %127 = vmatpush1.msra.mxu0 0.0
    %128 = vmatprep.subr.mxu0 0.0
    %129 = vmatpush1.msra.mxu0 0.0
    %130 = vmatprep.mubr.f32.mxu0 0.0
    %131 = vmatmul.mubr.f32.gmra.mrb[0].mxu0 %v56
    %v132 = vpop.f32.mrb[0].mxu0
    %v133 = vadd.f32 0.0, %v132
    %v134 = vpop.f32.mrb[0].mxu0
    %v135 = vadd.f32 0.0, %v134
    %136 = vmatprep.mubr.f32.mxu0 0.0
    %137 = vmatmul.mubr.f32.gmra.mrb[0].mxu0 %v59
    %v138 = vpop.f32.mrb[0].mxu0
    %v139 = vadd.f32 0.0, %v138
    %v140 = vpop.f32.mrb[0].mxu0
    %v141 = vadd.f32 0.0, %v140
    %142 = vdwg.mxu0
    %v144 = vsel %vm54, %v34, 0
    %v147 = vsel %vm54, %v35, 0
    %v150 = vsel %vm61, %v38, 0
    %v153 = vsel %vm61, %v39, 0
    %155 = vmatprep.subr.mxu0 %v153
    %156 = vmatpush1.msra.mxu0 %v150
    %157 = vmatprep.subr.mxu0 0.0
    %158 = vmatpush1.msra.mxu0 0.0
    %159 = vmatprep.subr.mxu0 0.0
    %160 = vmatpush1.msra.mxu0 0.0
    %161 = vmatprep.subr.mxu0 0.0
    %162 = vmatpush1.msra.mxu0 0.0
    %163 = vmatprep.subr.mxu0 0.0
    %164 = vmatpush1.msra.mxu0 0.0
    %165 = vmatprep.subr.mxu0 0.0
    %166 = vmatpush1.msra.mxu0 0.0
    %167 = vmatprep.subr.mxu0 0.0
    %168 = vmatpush1.msra.mxu0 0.0
    %169 = vmatprep.subr.mxu0 0.0
    %170 = vmatpush1.msra.mxu0 0.0
    %171 = vmatprep.subr.mxu0 0.0
    %172 = vmatpush1.msra.mxu0 0.0
    %173 = vmatprep.subr.mxu0 0.0
    %174 = vmatpush1.msra.mxu0 0.0
    %175 = vmatprep.subr.mxu0 0.0
    %176 = vmatpush1.msra.mxu0 0.0
    %177 = vmatprep.subr.mxu0 0.0
    %178 = vmatpush1.msra.mxu0 0.0
    %179 = vmatprep.subr.mxu0 0.0
    %180 = vmatpush1.msra.mxu0 0.0
    %181 = vmatprep.subr.mxu0 0.0
    %182 = vmatpush1.msra.mxu0 0.0
    %183 = vmatprep.subr.mxu0 0.0
    %184 = vmatpush1.msra.mxu0 0.0
    %185 = vmatprep.subr.mxu0 0.0
    %186 = vmatpush1.msra.mxu0 0.0
    %187 = vmatprep.subr.mxu0 0.0
    %188 = vmatpush1.msra.mxu0 0.0
    %189 = vmatprep.subr.mxu0 0.0
    %190 = vmatpush1.msra.mxu0 0.0
    %191 = vmatprep.subr.mxu0 0.0
    %192 = vmatpush1.msra.mxu0 0.0
    %193 = vmatprep.subr.mxu0 0.0
    %194 = vmatpush1.msra.mxu0 0.0
    %195 = vmatprep.subr.mxu0 0.0
    %196 = vmatpush1.msra.mxu0 0.0
    %197 = vmatprep.subr.mxu0 0.0
    %198 = vmatpush1.msra.mxu0 0.0
    %199 = vmatprep.subr.mxu0 0.0
    %200 = vmatpush1.msra.mxu0 0.0
    %201 = vmatprep.subr.mxu0 0.0
    %202 = vmatpush1.msra.mxu0 0.0
    %203 = vmatprep.subr.mxu0 0.0
    %204 = vmatpush1.msra.mxu0 0.0
    %205 = vmatprep.subr.mxu0 0.0
    %206 = vmatpush1.msra.mxu0 0.0
    %207 = vmatprep.subr.mxu0 0.0
    %208 = vmatpush1.msra.mxu0 0.0
    %209 = vmatprep.subr.mxu0 0.0
    %210 = vmatpush1.msra.mxu0 0.0
    %211 = vmatprep.subr.mxu0 0.0
    %212 = vmatpush1.msra.mxu0 0.0
    %213 = vmatprep.subr.mxu0 0.0
    %214 = vmatpush1.msra.mxu0 0.0
    %215 = vmatprep.subr.mxu0 0.0
    %216 = vmatpush1.msra.mxu0 0.0
    %217 = vmatprep.subr.mxu0 0.0
    %218 = vmatpush1.msra.mxu0 0.0
    %219 = vmatprep.mubr.f32.mxu0 0.0
    %220 = vmatmul.mubr.f32.gmra.mrb[0].mxu0 %v144
    %v221 = vpop.f32.mrb[0].mxu0
    %v222 = vadd.f32 %v133, %v221
    %v223 = vpop.f32.mrb[0].mxu0
    %v224 = vadd.f32 %v135, %v223
    %225 = vmatprep.mubr.f32.mxu0 0.0
    %226 = vmatmul.mubr.f32.gmra.mrb[0].mxu0 %v147
    %v227 = vpop.f32.mrb[0].mxu0
    %v228 = vadd.f32 %v139, %v227
    %v229 = vpop.f32.mrb[0].mxu0
    %v230 = vadd.f32 %v141, %v229
    %231 = vdwg.mxu0
    %v233 = vlaneseq
    %v234 = vshrl.u32 %v233, 7
    %v235 = vsub.s32 0, %v234
    %v236 = vrot.slane %v43, %v235
    %v237 = vlaneseq
    %v238 = vshrl.u32 %v237, 7
    %v239 = vsub.s32 1, %v238
    %v240 = vrot.slane %v43, %v239
    %v243 = vadd.f32 %v222, %v236
    %v244 = vadd.f32 %v224, %v240
    %v245 = vadd.f32 %v228, %v236
    %v246 = vadd.f32 %v230, %v240
    %v247 = vmax.f32 %v243, 0.0
    %v248 = vmax.f32 %v244, 0.0
    %v249 = vmax.f32 %v245, 0.0
    %v250 = vmax.f32 %v246, 0.0
    %v251 = vand.u32 2147483647, %v243
    %v252 = vand.u32 2147483647, %v244
    %v253 = vand.u32 2147483647, %v245
    %v254 = vand.u32 2147483647, %v246
    %v255 = vsub.f32 0.0, %v251
    %v256 = vsub.f32 0.0, %v252
    %v257 = vsub.f32 0.0, %v253
    %v258 = vsub.f32 0.0, %v254
    %v259 = vmul.f32 %v255, 1.442695
    %v260 = vpow.pop %v259
    %v261 = vmul.f32 %v256, 1.442695
    %v262 = vpow.pop %v261
    %v263 = vmul.f32 %v257, 1.442695
    %v264 = vpow.pop %v263
    %v265 = vmul.f32 %v258, 1.442695
    %v266 = vpow.pop %v265
    %v267 = vadd.f32 %v260, 1.0
    %v268 = vadd.f32 %v262, 1.0
    %v269 = vadd.f32 %v264, 1.0
    %v270 = vadd.f32 %v266, 1.0
    %v271 = vlog2.pop %v267
    %v272 = vmul.f32 %v271, 0.6931472
    %v273 = vlog2.pop %v268
    %v274 = vmul.f32 %v273, 0.6931472
    %v275 = vlog2.pop %v269
    %v276 = vmul.f32 %v275, 0.6931472
    %v277 = vlog2.pop %v270
    %v278 = vmul.f32 %v277, 0.6931472
    %v279 = vadd.f32 %v247, %v272
    %v280 = vadd.f32 %v248, %v274
    %v281 = vadd.f32 %v249, %v276
    %v282 = vadd.f32 %v250, %v278
    %v283 = vld [vmem:[#allocation2] sm:$0xff]
    %v284 = vld [vmem:[#allocation2 + $0x8] sm:$0xff]
    %v285 = vld [vmem:[#allocation2 + $0x10] sm:$0xff]
    %v286 = vld [vmem:[#allocation2 + $0x18] sm:$0xff]
    %v287 = vld [vmem:[#allocation2 + $0x20] sm:$0xff]
    %v288 = vld [vmem:[#allocation2 + $0x28] sm:$0xff]
    %v289 = vld [vmem:[#allocation2 + $0x30] sm:$0xff]
    %v290 = vld [vmem:[#allocation2 + $0x38] sm:$0xff]
    %v291 = vld [vmem:[#allocation2 + $0x40] sm:$0xff]
    %v292 = vld [vmem:[#allocation2 + $0x48] sm:$0xff]
    %v293 = vld [vmem:[#allocation2 + $0x50] sm:$0xff]
    %v294 = vld [vmem:[#allocation2 + $0x58] sm:$0xff]
    %v295 = vld [vmem:[#allocation2 + $0x60] sm:$0xff]
    %v296 = vld [vmem:[#allocation2 + $0x68] sm:$0xff]
    %v297 = vld [vmem:[#allocation2 + $0x70] sm:$0xff]
    %v298 = vld [vmem:[#allocation2 + $0x78] sm:$0xff]
    %v299 = vld [vmem:[#allocation2 + $0x80] sm:$0xff]
    %v300 = vld [vmem:[#allocation2 + $0x88] sm:$0xff]
    %v301 = vld [vmem:[#allocation2 + $0x90] sm:$0xff]
    %v302 = vld [vmem:[#allocation2 + $0x98] sm:$0xff]
    %v303 = vld [vmem:[#allocation2 + $0xa0] sm:$0xff]
    %v304 = vld [vmem:[#allocation2 + $0xa8] sm:$0xff]
    %v305 = vld [vmem:[#allocation2 + $0xb0] sm:$0xff]
    %v306 = vld [vmem:[#allocation2 + $0xb8] sm:$0xff]
    %v307 = vld [vmem:[#allocation2 + $0xc0] sm:$0xff]
    %v308 = vld [vmem:[#allocation2 + $0xc8] sm:$0xff]
    %v309 = vld [vmem:[#allocation2 + $0xd0] sm:$0xff]
    %v310 = vld [vmem:[#allocation2 + $0xd8] sm:$0xff]
    %v311 = vld [vmem:[#allocation2 + $0xe0] sm:$0xff]
    %v312 = vld [vmem:[#allocation2 + $0xe8] sm:$0xff]
    %v313 = vld [vmem:[#allocation2 + $0xf0] sm:$0xff]
    %v314 = vld [vmem:[#allocation2 + $0xf8] sm:$0xff]
    %v315 = vld [vmem:[#allocation2 + $0x100] sm:$0xff]
    %v316 = vld [vmem:[#allocation2 + $0x108] sm:$0xff]
    %v317 = vld [vmem:[#allocation2 + $0x110] sm:$0xff]
    %v318 = vld [vmem:[#allocation2 + $0x118] sm:$0xff]
    %v319 = vld [vmem:[#allocation2 + $0x120] sm:$0xff]
    %v320 = vld [vmem:[#allocation2 + $0x128] sm:$0xff]
    %v321 = vld [vmem:[#allocation2 + $0x130] sm:$0xff]
    %v322 = vld [vmem:[#allocation2 + $0x138] sm:$0xff]
    %v323 = vld [vmem:[#allocation2 + $0x140] sm:$0xff]
    %v324 = vld [vmem:[#allocation2 + $0x148] sm:$0xff]
    %v325 = vld [vmem:[#allocation2 + $0x150] sm:$0xff]
    %v326 = vld [vmem:[#allocation2 + $0x158] sm:$0xff]
    %v327 = vld [vmem:[#allocation2 + $0x160] sm:$0xff]
    %v328 = vld [vmem:[#allocation2 + $0x168] sm:$0xff]
    %v329 = vld [vmem:[#allocation2 + $0x170] sm:$0xff]
    %v330 = vld [vmem:[#allocation2 + $0x178] sm:$0xff]
    %v331 = vld [vmem:[#allocation2 + $0x180] sm:$0xff]
    %v332 = vld [vmem:[#allocation2 + $0x188] sm:$0xff]
    %v333 = vld [vmem:[#allocation2 + $0x190] sm:$0xff]
    %v334 = vld [vmem:[#allocation2 + $0x198] sm:$0xff]
    %v335 = vld [vmem:[#allocation2 + $0x1a0] sm:$0xff]
    %v336 = vld [vmem:[#allocation2 + $0x1a8] sm:$0xff]
    %v337 = vld [vmem:[#allocation2 + $0x1b0] sm:$0xff]
    %v338 = vld [vmem:[#allocation2 + $0x1b8] sm:$0xff]
    %v339 = vld [vmem:[#allocation2 + $0x1c0] sm:$0xff]
    %v340 = vld [vmem:[#allocation2 + $0x1c8] sm:$0xff]
    %v341 = vld [vmem:[#allocation2 + $0x1d0] sm:$0xff]
    %v342 = vld [vmem:[#allocation2 + $0x1d8] sm:$0xff]
    %v343 = vld [vmem:[#allocation2 + $0x1e0] sm:$0xff]
    %v344 = vld [vmem:[#allocation2 + $0x1e8] sm:$0xff]
    %v345 = vld [vmem:[#allocation2 + $0x1f0] sm:$0xff]
    %v346 = vld [vmem:[#allocation2 + $0x1f8] sm:$0xff]
    %v348 = vlaneseq
    %v349 = vshrl.u32 %v348, 7
    %v350 = vsub.s32 0, %v349
    %v351 = vrot.slane %v45, %v350
    %v352 = vlaneseq
    %v353 = vshrl.u32 %v352, 7
    %v354 = vsub.s32 1, %v353
    %v355 = vrot.slane %v45, %v354
    %358 = vmatprep.subr.mxu0 %v284
    %359 = vmatpush1.msra.mxu0 %v283
    %360 = vmatprep.subr.mxu0 %v286
    %361 = vmatpush1.msra.mxu0 %v285
    %362 = vmatprep.subr.mxu0 %v288
    %363 = vmatpush1.msra.mxu0 %v287
    %364 = vmatprep.subr.mxu0 %v290
    %365 = vmatpush1.msra.mxu0 %v289
    %366 = vmatprep.subr.mxu0 %v292
    %367 = vmatpush1.msra.mxu0 %v291
    %368 = vmatprep.subr.mxu0 %v294
    %369 = vmatpush1.msra.mxu0 %v293
    %370 = vmatprep.subr.mxu0 %v296
    %371 = vmatpush1.msra.mxu0 %v295
    %372 = vmatprep.subr.mxu0 %v298
    %373 = vmatpush1.msra.mxu0 %v297
    %374 = vmatprep.subr.mxu0 %v300
    %375 = vmatpush1.msra.mxu0 %v299
    %376 = vmatprep.subr.mxu0 %v302
    %377 = vmatpush1.msra.mxu0 %v301
    %378 = vmatprep.subr.mxu0 %v304
    %379 = vmatpush1.msra.mxu0 %v303
    %380 = vmatprep.subr.mxu0 %v306
    %381 = vmatpush1.msra.mxu0 %v305
    %382 = vmatprep.subr.mxu0 %v308
    %383 = vmatpush1.msra.mxu0 %v307
    %384 = vmatprep.subr.mxu0 %v310
    %385 = vmatpush1.msra.mxu0 %v309
    %386 = vmatprep.subr.mxu0 %v312
    %387 = vmatpush1.msra.mxu0 %v311
    %388 = vmatprep.subr.mxu0 %v314
    %389 = vmatpush1.msra.mxu0 %v313
    %390 = vmatprep.subr.mxu0 %v316
    %391 = vmatpush1.msra.mxu0 %v315
    %392 = vmatprep.subr.mxu0 %v318
    %393 = vmatpush1.msra.mxu0 %v317
    %394 = vmatprep.subr.mxu0 %v320
    %395 = vmatpush1.msra.mxu0 %v319
    %396 = vmatprep.subr.mxu0 %v322
    %397 = vmatpush1.msra.mxu0 %v321
    %398 = vmatprep.subr.mxu0 %v324
    %399 = vmatpush1.msra.mxu0 %v323
    %400 = vmatprep.subr.mxu0 %v326
    %401 = vmatpush1.msra.mxu0 %v325
    %402 = vmatprep.subr.mxu0 %v328
    %403 = vmatpush1.msra.mxu0 %v327
    %404 = vmatprep.subr.mxu0 %v330
    %405 = vmatpush1.msra.mxu0 %v329
    %406 = vmatprep.subr.mxu0 %v332
    %407 = vmatpush1.msra.mxu0 %v331
    %408 = vmatprep.subr.mxu0 %v334
    %409 = vmatpush1.msra.mxu0 %v333
    %410 = vmatprep.subr.mxu0 %v336
    %411 = vmatpush1.msra.mxu0 %v335
    %412 = vmatprep.subr.mxu0 %v338
    %413 = vmatpush1.msra.mxu0 %v337
    %414 = vmatprep.subr.mxu0 %v340
    %415 = vmatpush1.msra.mxu0 %v339
    %416 = vmatprep.subr.mxu0 %v342
    %417 = vmatpush1.msra.mxu0 %v341
    %418 = vmatprep.subr.mxu0 %v344
    %419 = vmatpush1.msra.mxu0 %v343
    %420 = vmatprep.subr.mxu0 %v346
    %421 = vmatpush1.msra.mxu0 %v345
    %422 = vmatprep.mubr.f32.mxu0 %v280
    %423 = vmatmul.mubr.f32.gmra.mrb[0].mxu0 %v279
    %v424 = vpop.f32.mrb[0].mxu0
    %v425 = vadd.f32 %v351, %v424
    %v426 = vpop.f32.mrb[0].mxu0
    %v427 = vadd.f32 %v355, %v426
    %428 = vmatprep.mubr.f32.mxu0 %v282
    %429 = vmatmul.mubr.f32.gmra.mrb[0].mxu0 %v281
    %v430 = vpop.f32.mrb[0].mxu0
    %v431 = vadd.f32 %v351, %v430
    %v432 = vpop.f32.mrb[0].mxu0
    %v433 = vadd.f32 %v355, %v432
    %434 = vdwg.mxu0
    %v435 = vmax.f32 %v425, 0.0
    %v436 = vmax.f32 %v427, 0.0
    %v437 = vmax.f32 %v431, 0.0
    %v438 = vmax.f32 %v433, 0.0
    %v439 = vand.u32 2147483647, %v425
    %v440 = vand.u32 2147483647, %v427
    %v441 = vand.u32 2147483647, %v431
    %v442 = vand.u32 2147483647, %v433
    %v443 = vsub.f32 0.0, %v439
    %v444 = vsub.f32 0.0, %v440
    %v445 = vsub.f32 0.0, %v441
    %v446 = vsub.f32 0.0, %v442
    %v447 = vmul.f32 %v443, 1.442695
    %v448 = vpow.pop %v447
    %v449 = vmul.f32 %v444, 1.442695
    %v450 = vpow.pop %v449
    %v451 = vmul.f32 %v445, 1.442695
    %v452 = vpow.pop %v451
    %v453 = vmul.f32 %v446, 1.442695
    %v454 = vpow.pop %v453
    %v455 = vadd.f32 %v448, 1.0
    %v456 = vadd.f32 %v450, 1.0
    %v457 = vadd.f32 %v452, 1.0
    %v458 = vadd.f32 %v454, 1.0
    %v459 = vlog2.pop %v455
    %v460 = vmul.f32 %v459, 0.6931472
    %v461 = vlog2.pop %v456
    %v462 = vmul.f32 %v461, 0.6931472
    %v463 = vlog2.pop %v457
    %v464 = vmul.f32 %v463, 0.6931472
    %v465 = vlog2.pop %v458
    %v466 = vmul.f32 %v465, 0.6931472
    %v467 = vadd.f32 %v435, %v460
    %v468 = vadd.f32 %v436, %v462
    %v469 = vadd.f32 %v437, %v464
    %v470 = vadd.f32 %v438, %v466
    %s471 = scalar_lea.vmem [#allocation2], 512
    %v472 = vld [vmem:[%s471] sm:$0xff]
    %v473 = vld [vmem:[%s471 + $0x8] sm:$0xff]
    %v474 = vld [vmem:[%s471 + $0x10] sm:$0xff]
    %v475 = vld [vmem:[%s471 + $0x18] sm:$0xff]
    %v476 = vld [vmem:[%s471 + $0x20] sm:$0xff]
    %v477 = vld [vmem:[%s471 + $0x28] sm:$0xff]
    %v478 = vld [vmem:[%s471 + $0x30] sm:$0xff]
    %v479 = vld [vmem:[%s471 + $0x38] sm:$0xff]
    %v480 = vld [vmem:[%s471 + $0x40] sm:$0xff]
    %v481 = vld [vmem:[%s471 + $0x48] sm:$0xff]
    %v482 = vld [vmem:[%s471 + $0x50] sm:$0xff]
    %v483 = vld [vmem:[%s471 + $0x58] sm:$0xff]
    %v484 = vld [vmem:[%s471 + $0x60] sm:$0xff]
    %v485 = vld [vmem:[%s471 + $0x68] sm:$0xff]
    %v486 = vld [vmem:[%s471 + $0x70] sm:$0xff]
    %v487 = vld [vmem:[%s471 + $0x78] sm:$0xff]
    %v488 = vld [vmem:[%s471 + $0x80] sm:$0xff]
    %v489 = vld [vmem:[%s471 + $0x88] sm:$0xff]
    %v490 = vld [vmem:[%s471 + $0x90] sm:$0xff]
    %v491 = vld [vmem:[%s471 + $0x98] sm:$0xff]
    %v492 = vld [vmem:[%s471 + $0xa0] sm:$0xff]
    %v493 = vld [vmem:[%s471 + $0xa8] sm:$0xff]
    %v494 = vld [vmem:[%s471 + $0xb0] sm:$0xff]
    %v495 = vld [vmem:[%s471 + $0xb8] sm:$0xff]
    %v496 = vld [vmem:[%s471 + $0xc0] sm:$0xff]
    %v497 = vld [vmem:[%s471 + $0xc8] sm:$0xff]
    %v498 = vld [vmem:[%s471 + $0xd0] sm:$0xff]
    %v499 = vld [vmem:[%s471 + $0xd8] sm:$0xff]
    %v500 = vld [vmem:[%s471 + $0xe0] sm:$0xff]
    %v501 = vld [vmem:[%s471 + $0xe8] sm:$0xff]
    %v502 = vld [vmem:[%s471 + $0xf0] sm:$0xff]
    %v503 = vld [vmem:[%s471 + $0xf8] sm:$0xff]
    %v504 = vld [vmem:[%s471 + $0x100] sm:$0xff]
    %v505 = vld [vmem:[%s471 + $0x108] sm:$0xff]
    %v506 = vld [vmem:[%s471 + $0x110] sm:$0xff]
    %v507 = vld [vmem:[%s471 + $0x118] sm:$0xff]
    %v508 = vld [vmem:[%s471 + $0x120] sm:$0xff]
    %v509 = vld [vmem:[%s471 + $0x128] sm:$0xff]
    %v510 = vld [vmem:[%s471 + $0x130] sm:$0xff]
    %v511 = vld [vmem:[%s471 + $0x138] sm:$0xff]
    %v512 = vld [vmem:[%s471 + $0x140] sm:$0xff]
    %v513 = vld [vmem:[%s471 + $0x148] sm:$0xff]
    %v514 = vld [vmem:[%s471 + $0x150] sm:$0xff]
    %v515 = vld [vmem:[%s471 + $0x158] sm:$0xff]
    %v516 = vld [vmem:[%s471 + $0x160] sm:$0xff]
    %v517 = vld [vmem:[%s471 + $0x168] sm:$0xff]
    %v518 = vld [vmem:[%s471 + $0x170] sm:$0xff]
    %v519 = vld [vmem:[%s471 + $0x178] sm:$0xff]
    %v520 = vld [vmem:[%s471 + $0x180] sm:$0xff]
    %v521 = vld [vmem:[%s471 + $0x188] sm:$0xff]
    %v522 = vld [vmem:[%s471 + $0x190] sm:$0xff]
    %v523 = vld [vmem:[%s471 + $0x198] sm:$0xff]
    %v524 = vld [vmem:[%s471 + $0x1a0] sm:$0xff]
    %v525 = vld [vmem:[%s471 + $0x1a8] sm:$0xff]
    %v526 = vld [vmem:[%s471 + $0x1b0] sm:$0xff]
    %v527 = vld [vmem:[%s471 + $0x1b8] sm:$0xff]
    %v528 = vld [vmem:[%s471 + $0x1c0] sm:$0xff]
    %v529 = vld [vmem:[%s471 + $0x1c8] sm:$0xff]
    %v530 = vld [vmem:[%s471 + $0x1d0] sm:$0xff]
    %v531 = vld [vmem:[%s471 + $0x1d8] sm:$0xff]
    %v532 = vld [vmem:[%s471 + $0x1e0] sm:$0xff]
    %v533 = vld [vmem:[%s471 + $0x1e8] sm:$0xff]
    %v534 = vld [vmem:[%s471 + $0x1f0] sm:$0xff]
    %v535 = vld [vmem:[%s471 + $0x1f8] sm:$0xff]
    %v537 = vlaneseq
    %v538 = vshrl.u32 %v537, 7
    %v539 = vsub.s32 0, %v538
    %v540 = vrot.slane %v47, %v539
    %v541 = vlaneseq
    %v542 = vshrl.u32 %v541, 7
    %v543 = vsub.s32 1, %v542
    %v544 = vrot.slane %v47, %v543
    %547 = vmatprep.subr.mxu0 %v473
    %548 = vmatpush1.msra.mxu0 %v472
    %549 = vmatprep.subr.mxu0 %v475
    %550 = vmatpush1.msra.mxu0 %v474
    %551 = vmatprep.subr.mxu0 %v477
    %552 = vmatpush1.msra.mxu0 %v476
    %553 = vmatprep.subr.mxu0 %v479
    %554 = vmatpush1.msra.mxu0 %v478
    %555 = vmatprep.subr.mxu0 %v481
    %556 = vmatpush1.msra.mxu0 %v480
    %557 = vmatprep.subr.mxu0 %v483
    %558 = vmatpush1.msra.mxu0 %v482
    %559 = vmatprep.subr.mxu0 %v485
    %560 = vmatpush1.msra.mxu0 %v484
    %561 = vmatprep.subr.mxu0 %v487
    %562 = vmatpush1.msra.mxu0 %v486
    %563 = vmatprep.subr.mxu0 %v489
    %564 = vmatpush1.msra.mxu0 %v488
    %565 = vmatprep.subr.mxu0 %v491
    %566 = vmatpush1.msra.mxu0 %v490
    %567 = vmatprep.subr.mxu0 %v493
    %568 = vmatpush1.msra.mxu0 %v492
    %569 = vmatprep.subr.mxu0 %v495
    %570 = vmatpush1.msra.mxu0 %v494
    %571 = vmatprep.subr.mxu0 %v497
    %572 = vmatpush1.msra.mxu0 %v496
    %573 = vmatprep.subr.mxu0 %v499
    %574 = vmatpush1.msra.mxu0 %v498
    %575 = vmatprep.subr.mxu0 %v501
    %576 = vmatpush1.msra.mxu0 %v500
    %577 = vmatprep.subr.mxu0 %v503
    %578 = vmatpush1.msra.mxu0 %v502
    %579 = vmatprep.subr.mxu0 %v505
    %580 = vmatpush1.msra.mxu0 %v504
    %581 = vmatprep.subr.mxu0 %v507
    %582 = vmatpush1.msra.mxu0 %v506
    %583 = vmatprep.subr.mxu0 %v509
    %584 = vmatpush1.msra.mxu0 %v508
    %585 = vmatprep.subr.mxu0 %v511
    %586 = vmatpush1.msra.mxu0 %v510
    %587 = vmatprep.subr.mxu0 %v513
    %588 = vmatpush1.msra.mxu0 %v512
    %589 = vmatprep.subr.mxu0 %v515
    %590 = vmatpush1.msra.mxu0 %v514
    %591 = vmatprep.subr.mxu0 %v517
    %592 = vmatpush1.msra.mxu0 %v516
    %593 = vmatprep.subr.mxu0 %v519
    %594 = vmatpush1.msra.mxu0 %v518
    %595 = vmatprep.subr.mxu0 %v521
    %596 = vmatpush1.msra.mxu0 %v520
    %597 = vmatprep.subr.mxu0 %v523
    %598 = vmatpush1.msra.mxu0 %v522
    %599 = vmatprep.subr.mxu0 %v525
    %600 = vmatpush1.msra.mxu0 %v524
    %601 = vmatprep.subr.mxu0 %v527
    %602 = vmatpush1.msra.mxu0 %v526
    %603 = vmatprep.subr.mxu0 %v529
    %604 = vmatpush1.msra.mxu0 %v528
    %605 = vmatprep.subr.mxu0 %v531
    %606 = vmatpush1.msra.mxu0 %v530
    %607 = vmatprep.subr.mxu0 %v533
    %608 = vmatpush1.msra.mxu0 %v532
    %609 = vmatprep.subr.mxu0 %v535
    %610 = vmatpush1.msra.mxu0 %v534
    %611 = vmatprep.mubr.f32.mxu0 %v468
    %612 = vmatmul.mubr.f32.gmra.mrb[0].mxu0 %v467
    %v613 = vpop.f32.mrb[0].mxu0
    %v614 = vadd.f32 %v540, %v613
    %v615 = vpop.f32.mrb[0].mxu0
    %v616 = vadd.f32 %v544, %v615
    %617 = vmatprep.mubr.f32.mxu0 %v470
    %618 = vmatmul.mubr.f32.gmra.mrb[0].mxu0 %v469
    %v619 = vpop.f32.mrb[0].mxu0
    %v620 = vadd.f32 %v540, %v619
    %v621 = vpop.f32.mrb[0].mxu0
    %v622 = vadd.f32 %v544, %v621
    %623 = vdwg.mxu0
    %v624 = vmax.f32 %v614, 0.0
    %v625 = vmax.f32 %v616, 0.0
    %v626 = vmax.f32 %v620, 0.0
    %v627 = vmax.f32 %v622, 0.0
    %v628 = vand.u32 2147483647, %v614
    %v629 = vand.u32 2147483647, %v616
    %v630 = vand.u32 2147483647, %v620
    %v631 = vand.u32 2147483647, %v622
    %v632 = vsub.f32 0.0, %v628
    %v633 = vsub.f32 0.0, %v629
    %v634 = vsub.f32 0.0, %v630
    %v635 = vsub.f32 0.0, %v631
    %v636 = vmul.f32 %v632, 1.442695
    %v637 = vpow.pop %v636
    %v638 = vmul.f32 %v633, 1.442695
    %v639 = vpow.pop %v638
    %v640 = vmul.f32 %v634, 1.442695
    %v641 = vpow.pop %v640
    %v642 = vmul.f32 %v635, 1.442695
    %v643 = vpow.pop %v642
    %v644 = vadd.f32 %v637, 1.0
    %v645 = vadd.f32 %v639, 1.0
    %v646 = vadd.f32 %v641, 1.0
    %v647 = vadd.f32 %v643, 1.0
    %v648 = vlog2.pop %v644
    %v649 = vmul.f32 %v648, 0.6931472
    %v650 = vlog2.pop %v645
    %v651 = vmul.f32 %v650, 0.6931472
    %v652 = vlog2.pop %v646
    %v653 = vmul.f32 %v652, 0.6931472
    %v654 = vlog2.pop %v647
    %v655 = vmul.f32 %v654, 0.6931472
    %v656 = vadd.f32 %v624, %v649
    %v657 = vadd.f32 %v625, %v651
    %v658 = vadd.f32 %v626, %v653
    %v659 = vadd.f32 %v627, %v655
    %s660 = scalar_lea.vmem [#allocation2], 1024
    %v661 = vld [vmem:[%s660] sm:$0xff]
    %v662 = vld [vmem:[%s660 + $0x8] sm:$0xff]
    %v663 = vld [vmem:[%s660 + $0x10] sm:$0xff]
    %v664 = vld [vmem:[%s660 + $0x18] sm:$0xff]
    %v665 = vld [vmem:[%s660 + $0x20] sm:$0xff]
    %v666 = vld [vmem:[%s660 + $0x28] sm:$0xff]
    %v667 = vld [vmem:[%s660 + $0x30] sm:$0xff]
    %v668 = vld [vmem:[%s660 + $0x38] sm:$0xff]
    %v669 = vld [vmem:[%s660 + $0x40] sm:$0xff]
    %v670 = vld [vmem:[%s660 + $0x48] sm:$0xff]
    %v671 = vld [vmem:[%s660 + $0x50] sm:$0xff]
    %v672 = vld [vmem:[%s660 + $0x58] sm:$0xff]
    %v673 = vld [vmem:[%s660 + $0x60] sm:$0xff]
    %v674 = vld [vmem:[%s660 + $0x68] sm:$0xff]
    %v675 = vld [vmem:[%s660 + $0x70] sm:$0xff]
    %v676 = vld [vmem:[%s660 + $0x78] sm:$0xff]
    %v677 = vld [vmem:[%s660 + $0x80] sm:$0xff]
    %v678 = vld [vmem:[%s660 + $0x88] sm:$0xff]
    %v679 = vld [vmem:[%s660 + $0x90] sm:$0xff]
    %v680 = vld [vmem:[%s660 + $0x98] sm:$0xff]
    %v681 = vld [vmem:[%s660 + $0xa0] sm:$0xff]
    %v682 = vld [vmem:[%s660 + $0xa8] sm:$0xff]
    %v683 = vld [vmem:[%s660 + $0xb0] sm:$0xff]
    %v684 = vld [vmem:[%s660 + $0xb8] sm:$0xff]
    %v685 = vld [vmem:[%s660 + $0xc0] sm:$0xff]
    %v686 = vld [vmem:[%s660 + $0xc8] sm:$0xff]
    %v687 = vld [vmem:[%s660 + $0xd0] sm:$0xff]
    %v688 = vld [vmem:[%s660 + $0xd8] sm:$0xff]
    %v689 = vld [vmem:[%s660 + $0xe0] sm:$0xff]
    %v690 = vld [vmem:[%s660 + $0xe8] sm:$0xff]
    %v691 = vld [vmem:[%s660 + $0xf0] sm:$0xff]
    %v692 = vld [vmem:[%s660 + $0xf8] sm:$0xff]
    %v693 = vld [vmem:[%s660 + $0x100] sm:$0xff]
    %v694 = vld [vmem:[%s660 + $0x108] sm:$0xff]
    %v695 = vld [vmem:[%s660 + $0x110] sm:$0xff]
    %v696 = vld [vmem:[%s660 + $0x118] sm:$0xff]
    %v697 = vld [vmem:[%s660 + $0x120] sm:$0xff]
    %v698 = vld [vmem:[%s660 + $0x128] sm:$0xff]
    %v699 = vld [vmem:[%s660 + $0x130] sm:$0xff]
    %v700 = vld [vmem:[%s660 + $0x138] sm:$0xff]
    %v701 = vld [vmem:[%s660 + $0x140] sm:$0xff]
    %v702 = vld [vmem:[%s660 + $0x148] sm:$0xff]
    %v703 = vld [vmem:[%s660 + $0x150] sm:$0xff]
    %v704 = vld [vmem:[%s660 + $0x158] sm:$0xff]
    %v705 = vld [vmem:[%s660 + $0x160] sm:$0xff]
    %v706 = vld [vmem:[%s660 + $0x168] sm:$0xff]
    %v707 = vld [vmem:[%s660 + $0x170] sm:$0xff]
    %v708 = vld [vmem:[%s660 + $0x178] sm:$0xff]
    %v709 = vld [vmem:[%s660 + $0x180] sm:$0xff]
    %v710 = vld [vmem:[%s660 + $0x188] sm:$0xff]
    %v711 = vld [vmem:[%s660 + $0x190] sm:$0xff]
    %v712 = vld [vmem:[%s660 + $0x198] sm:$0xff]
    %v713 = vld [vmem:[%s660 + $0x1a0] sm:$0xff]
    %v714 = vld [vmem:[%s660 + $0x1a8] sm:$0xff]
    %v715 = vld [vmem:[%s660 + $0x1b0] sm:$0xff]
    %v716 = vld [vmem:[%s660 + $0x1b8] sm:$0xff]
    %v717 = vld [vmem:[%s660 + $0x1c0] sm:$0xff]
    %v718 = vld [vmem:[%s660 + $0x1c8] sm:$0xff]
    %v719 = vld [vmem:[%s660 + $0x1d0] sm:$0xff]
    %v720 = vld [vmem:[%s660 + $0x1d8] sm:$0xff]
    %v721 = vld [vmem:[%s660 + $0x1e0] sm:$0xff]
    %v722 = vld [vmem:[%s660 + $0x1e8] sm:$0xff]
    %v723 = vld [vmem:[%s660 + $0x1f0] sm:$0xff]
    %v724 = vld [vmem:[%s660 + $0x1f8] sm:$0xff]
    %v726 = vlaneseq
    %v727 = vshrl.u32 %v726, 7
    %v728 = vsub.s32 0, %v727
    %v729 = vrot.slane %v49, %v728
    %v730 = vlaneseq
    %v731 = vshrl.u32 %v730, 7
    %v732 = vsub.s32 1, %v731
    %v733 = vrot.slane %v49, %v732
    %736 = vmatprep.subr.mxu0 %v662
    %737 = vmatpush1.msra.mxu0 %v661
    %738 = vmatprep.subr.mxu0 %v664
    %739 = vmatpush1.msra.mxu0 %v663
    %740 = vmatprep.subr.mxu0 %v666
    %741 = vmatpush1.msra.mxu0 %v665
    %742 = vmatprep.subr.mxu0 %v668
    %743 = vmatpush1.msra.mxu0 %v667
    %744 = vmatprep.subr.mxu0 %v670
    %745 = vmatpush1.msra.mxu0 %v669
    %746 = vmatprep.subr.mxu0 %v672
    %747 = vmatpush1.msra.mxu0 %v671
    %748 = vmatprep.subr.mxu0 %v674
    %749 = vmatpush1.msra.mxu0 %v673
    %750 = vmatprep.subr.mxu0 %v676
    %751 = vmatpush1.msra.mxu0 %v675
    %752 = vmatprep.subr.mxu0 %v678
    %753 = vmatpush1.msra.mxu0 %v677
    %754 = vmatprep.subr.mxu0 %v680
    %755 = vmatpush1.msra.mxu0 %v679
    %756 = vmatprep.subr.mxu0 %v682
    %757 = vmatpush1.msra.mxu0 %v681
    %758 = vmatprep.subr.mxu0 %v684
    %759 = vmatpush1.msra.mxu0 %v683
    %760 = vmatprep.subr.mxu0 %v686
    %761 = vmatpush1.msra.mxu0 %v685
    %762 = vmatprep.subr.mxu0 %v688
    %763 = vmatpush1.msra.mxu0 %v687
    %764 = vmatprep.subr.mxu0 %v690
    %765 = vmatpush1.msra.mxu0 %v689
    %766 = vmatprep.subr.mxu0 %v692
    %767 = vmatpush1.msra.mxu0 %v691
    %768 = vmatprep.subr.mxu0 %v694
    %769 = vmatpush1.msra.mxu0 %v693
    %770 = vmatprep.subr.mxu0 %v696
    %771 = vmatpush1.msra.mxu0 %v695
    %772 = vmatprep.subr.mxu0 %v698
    %773 = vmatpush1.msra.mxu0 %v697
    %774 = vmatprep.subr.mxu0 %v700
    %775 = vmatpush1.msra.mxu0 %v699
    %776 = vmatprep.subr.mxu0 %v702
    %777 = vmatpush1.msra.mxu0 %v701
    %778 = vmatprep.subr.mxu0 %v704
    %779 = vmatpush1.msra.mxu0 %v703
    %780 = vmatprep.subr.mxu0 %v706
    %781 = vmatpush1.msra.mxu0 %v705
    %782 = vmatprep.subr.mxu0 %v708
    %783 = vmatpush1.msra.mxu0 %v707
    %784 = vmatprep.subr.mxu0 %v710
    %785 = vmatpush1.msra.mxu0 %v709
    %786 = vmatprep.subr.mxu0 %v712
    %787 = vmatpush1.msra.mxu0 %v711
    %788 = vmatprep.subr.mxu0 %v714
    %789 = vmatpush1.msra.mxu0 %v713
    %790 = vmatprep.subr.mxu0 %v716
    %791 = vmatpush1.msra.mxu0 %v715
    %792 = vmatprep.subr.mxu0 %v718
    %793 = vmatpush1.msra.mxu0 %v717
    %794 = vmatprep.subr.mxu0 %v720
    %795 = vmatpush1.msra.mxu0 %v719
    %796 = vmatprep.subr.mxu0 %v722
    %797 = vmatpush1.msra.mxu0 %v721
    %798 = vmatprep.subr.mxu0 %v724
    %799 = vmatpush1.msra.mxu0 %v723
    %800 = vmatprep.mubr.f32.mxu0 %v657
    %801 = vmatmul.mubr.f32.gmra.mrb[0].mxu0 %v656
    %v802 = vpop.f32.mrb[0].mxu0
    %v803 = vadd.f32 %v729, %v802
    %v804 = vpop.f32.mrb[0].mxu0
    %v805 = vadd.f32 %v733, %v804
    %806 = vmatprep.mubr.f32.mxu0 %v659
    %807 = vmatmul.mubr.f32.gmra.mrb[0].mxu0 %v658
    %v808 = vpop.f32.mrb[0].mxu0
    %v809 = vadd.f32 %v729, %v808
    %v810 = vpop.f32.mrb[0].mxu0
    %v811 = vadd.f32 %v733, %v810
    %812 = vdwg.mxu0
    %v813 = vmul.f32 %v803, 0.5
    %v814 = vmul.f32 %v805, 0.5
    %v815 = vmul.f32 %v809, 0.5
    %v816 = vmul.f32 %v811, 0.5
    %v817 = vtanh.pop %v813
    %v818 = vtanh.pop %v814
    %v819 = vtanh.pop %v815
    %v820 = vtanh.pop %v816
    %v821 = vld [vmem:[%s4] sm:$0x1]
    %v823 = vlaneseq
    %v824 = vshrl.u32 %v823, 7
    %v825 = vsub.s32 0, %v824
    %v826 = vrot.slane %v821, %v825
    %v828 = vmul.f32 %v826, %v817
    %v829 = vmul.f32 %v826, %v819
    %v830 = vmul.f32 %v828, %v818
    %v831 = vmul.f32 %v829, %v820
    %832 = vadd.xlane.f32.xlu0 %v830
    %v833 = vpop.xlane.xlu0 %832
    %834 = vadd.xlane.f32.xlu0 %v831
    %v835 = vpop.xlane.xlu0 %834
    %v836 = vsub.f32 %v34, %v36
    %v837 = vsub.f32 %v35, %v37
    %v838 = vmul.f32 %v836, -1.0
    %v839 = vmul.f32 %v837, -1.0
    %v840 = vmul.f32 %v838, 1.442695
    %v841 = vpow.pop %v840
    %v842 = vmul.f32 %v839, 1.442695
    %v843 = vpow.pop %v842
    %v844 = vmul.f32 %v841, %v833
    %v845 = vmul.f32 %v843, %v835
    %vm846 = vcmask 7168
    %847 = vst.msk [vmem:[%s5] sm:$0xff] %vm846, %v844
    %848 = vst.msk [vmem:[%s5 + $0x8] sm:$0xff] %vm846, %v845
    // Predicated region
    $region26: #{tpu_custom_call.1} parent=1 // pred_check
      _
    $region27: #{tpu_custom_call.1} parent=1 // pred_check_branch
      %850 = sbr.rel (0) target = $region29
    $region28: #{tpu_custom_call.1} parent=1 // pred_region
      _
    $region29: #{tpu_custom_call.1} parent=1 // pred_fallthru
      _
    // Predicated region
    $region30: #{tpu_custom_call.1} parent=1 // pred_check
      _
    $region31: #{tpu_custom_call.1} parent=1 // pred_check_branch
      %852 = sbr.rel (0) target = $region33
    $region32: #{tpu_custom_call.1} parent=1 // pred_region
      _
    $region33: #{tpu_custom_call.1} parent=1 // pred_fallthru
      _
    %853 = vsyncpa [#allocation3], 1

</llo_original>
